<compile_context>
chip_gen: v7x
topology: tpu7x:2x2x1
jax: 0.10.0
libtpu: 0.0.40
codegen_flags: <defaults>
</compile_context>

<pallas_src>
import jax
import jax.numpy as jnp
from jax import lax
from jax.experimental import pallas as pl
from jax.experimental.pallas import tpu as pltpu

EPS = 1e-5


# ----------------------------- Pallas kernels ------------------------------ #

def conv_stats_kernel(w_ref, x_ref, sum_ref, sq_ref):
    # w_ref:   (R, K)  bf16, R = 4*C_out (phase-expanded channels), K = 4*C_in
    # x_ref:   (K, TM) bf16, lane-dense im2col tile
    # sum_ref: (R, 1)  f32, per-row running sum       (resident accumulator)
    # sq_ref:  (R, 1)  f32, per-row running sum of sq (resident accumulator)
    @pl.when(pl.program_id(0) == 0)
    def _():
        sum_ref[...] = jnp.zeros_like(sum_ref)
        sq_ref[...] = jnp.zeros_like(sq_ref)

    y = jnp.dot(w_ref[...], x_ref[...], preferred_element_type=jnp.float32)
    sum_ref[...] += jnp.sum(y, axis=1, keepdims=True)
    sq_ref[...] += jnp.sum(y * y, axis=1, keepdims=True)


def conv_bn_relu_kernel(w_ref, scale_ref, shift_ref, x_ref, o_ref):
    # w_ref:     (R, K)  bf16
    # scale_ref: (R, 1)  f32   gamma * rsqrt(var + eps)   (per phase-row)
    # shift_ref: (R, 1)  f32   beta  - mean * scale
    # x_ref:     (K, TM) bf16
    # o_ref:     (R, TM) f32   lane-dense output tile
    y = jnp.dot(w_ref[...], x_ref[...], preferred_element_type=jnp.float32)
    o_ref[...] = jnp.maximum(y * scale_ref[...] + shift_ref[...], 0.0)


# -------------------------------- wrapper ---------------------------------- #

def _pick_tile(m, cap):
    """Largest multiple of 128 <= cap that divides m (or m itself if m % 128)."""
    if m % 128 != 0:
        return m  # single full-extent block (allowed when block == array dim)
    best, t = 128, 128
    while t <= min(m, cap):
        if m % t == 0:
            best = t
        t += 128
    return best


def upconv_block(x_nchw, weight, bias, gamma, beta, *, tm=256):
    """x_nchw: (N, C_in, H, W); weight: (C_in, C_out, 3, 3) (ConvTranspose2d layout).
    Returns (N, C_out, 2H, 2W) float32, matching ReLU(BN_train(ConvTranspose2d(x)))."""
    del bias  # cancels exactly under training-mode BatchNorm (mean subtraction)
    N, C_in, H, W = x_nchw.shape
    C_out = weight.shape[1]
    OH, OW = 2 * H, 2 * W
    Mp = N * H * W          # matmul columns: one per 2x2 output block
    K = 4 * C_in            # contraction: 2x2 input neighbourhood x C_in
    R = 4 * C_out           # rows: (c_out, py, px) phase-expanded channels
    M_total = N * OH * OW   # BN sample count per channel

    # ---- im2col: lane-dense (K, M') slab of 2x2 input neighbourhoods ----
    x_nhwc = jnp.transpose(x_nchw, (0, 2, 3, 1)).astype(jnp.float32)
    x_pad = jnp.pad(x_nhwc, ((0, 0), (0, 1), (0, 1), (0, 0)))      # (N, H+1, W+1, C)
    cols = jnp.stack([x_pad[:, di:di + H, dj:dj + W, :]
                      for di in (0, 1) for dj in (0, 1)], axis=0)  # (4, N, H, W, C)
    x_cols = (jnp.transpose(cols, (0, 4, 1, 2, 3))                 # (4, C, N, H, W)
                 .reshape(K, Mp)
                 .astype(jnp.bfloat16))

    # ---- phase-decomposed weight matrix (R, K) ----
    # Coefficient of x[i+di, j+dj, ci] in y[2i+py, 2j+px, co] is
    # weight[ci, co, 1-2*di+py, 1-2*dj+px] when those kernel indices are valid.
    w6 = jnp.zeros((2, 2, C_in, C_out, 2, 2), jnp.float32)  # (di, dj, ci, co, py, px)
    for di in (0, 1):
        for py in (0, 1):
            ky = 1 - 2 * di + py
            if not 0 <= ky <= 2:
                continue
            for dj in (0, 1):
                for px in (0, 1):
                    kx = 1 - 2 * dj + px
                    if not 0 <= kx <= 2:
                        continue
                    w6 = w6.at[di, dj, :, :, py, px].set(weight[:, :, ky, kx])
    w_mat = jnp.transpose(w6.reshape(K, R)).astype(jnp.bfloat16)   # (R, K)

    tm_eff = _pick_tile(Mp, tm)
    grid = (Mp // tm_eff,)

    # ---- pass 1: conv matmul + single-pass per-row sum / sum-of-squares ----
    sums, sqs = pl.pallas_call(
        conv_stats_kernel,
        out_shape=(jax.ShapeDtypeStruct((R, 1), jnp.float32),
                   jax.ShapeDtypeStruct((R, 1), jnp.float32)),
        grid=grid,
        in_specs=[pl.BlockSpec((R, K), lambda i: (0, 0)),
                  pl.BlockSpec((K, tm_eff), lambda i: (0, i))],
        out_specs=(pl.BlockSpec((R, 1), lambda i: (0, 0)),
                   pl.BlockSpec((R, 1), lambda i: (0, 0))),
        compiler_params=pltpu.CompilerParams(
            dimension_semantics=("arbitrary",)),
    )(w_mat, x_cols)

    # ---- tiny per-channel BN scale/shift (each channel owns 4 phase rows) ----
    # NOTE: E[x^2]-E[x]^2 form; fine at these magnitudes (guarded with max(.,0)).
    # TODO(synk): switch to Welford-style tile combination for very large M.
    ch_sum = sums.reshape(C_out, 4).sum(axis=1)
    ch_sq = sqs.reshape(C_out, 4).sum(axis=1)
    mean = ch_sum / M_total
    var = jnp.maximum(ch_sq / M_total - mean * mean, 0.0)
    inv = lax.rsqrt(var + EPS)
    scale_c = gamma.astype(jnp.float32) * inv
    shift_c = beta.astype(jnp.float32) - mean * scale_c
    scale_r = jnp.repeat(scale_c, 4).reshape(R, 1)
    shift_r = jnp.repeat(shift_c, 4).reshape(R, 1)

    # ---- pass 2: recompute conv tile, normalize + affine + ReLU ----
    out_rm = pl.pallas_call(
        conv_bn_relu_kernel,
        out_shape=jax.ShapeDtypeStruct((R, Mp), jnp.float32),
        grid=grid,
        in_specs=[pl.BlockSpec((R, K), lambda i: (0, 0)),
                  pl.BlockSpec((R, 1), lambda i: (0, 0)),
                  pl.BlockSpec((R, 1), lambda i: (0, 0)),
                  pl.BlockSpec((K, tm_eff), lambda i: (0, i))],
        out_specs=pl.BlockSpec((R, tm_eff), lambda i: (0, i)),
        compiler_params=pltpu.CompilerParams(
            dimension_semantics=("parallel",)),
    )(w_mat, scale_r, shift_r, x_cols)

    # pixel-shuffle back to NCHW: rows are (co, py, px), columns are (n, i, j)
    out6 = out_rm.reshape(C_out, 2, 2, N, H, W)
    out = jnp.transpose(out6, (3, 0, 4, 1, 5, 2)).reshape(N, C_out, OH, OW)
    return out


# ------------------------------- reference --------------------------------- #

def reference(x_nchw, weight, bias, gamma, beta):
    """Pure-JAX reference (lax dilated-conv formulation of conv-transpose + BN + ReLU).
    Conv inputs are cast to bf16 to mirror the kernel's bf16-input / f32-accumulate
    MXU matmul; all other math is f32."""
    x_nhwc = jnp.transpose(x_nchw, (0, 2, 3, 1)).astype(jnp.bfloat16)
    w_hwio = jnp.transpose(weight[:, :, ::-1, ::-1], (2, 3, 0, 1)).astype(jnp.bfloat16)
    y = lax.conv_general_dilated(
        x_nhwc, w_hwio,
        window_strides=(1, 1),
        padding=((1, 2), (1, 2)),
        lhs_dilation=(2, 2),
        dimension_numbers=("NHWC", "HWIO", "NHWC"),
        preferred_element_type=jnp.float32,
    ) + bias.reshape(1, 1, 1, -1)
    mean = jnp.mean(y, axis=(0, 1, 2), keepdims=True)
    var = jnp.mean((y - mean) ** 2, axis=(0, 1, 2), keepdims=True)
    y = (y - mean) * lax.rsqrt(var + EPS)
    y = y * gamma.reshape(1, 1, 1, -1) + beta.reshape(1, 1, 1, -1)
    y = jnp.maximum(y, 0.0)
    return jnp.transpose(y, (0, 3, 1, 2))


if __name__ == "__main__":
    N, C_in, C_out, H, W = 2, 4, 8, 16, 16

    key = jax.random.PRNGKey(0)
    kx, kw, kb, kg, kbe = jax.random.split(key, 5)

    x = jax.random.normal(kx, (N, C_in, H, W), jnp.float32)
    # ConvTranspose2d parameters: weight (C_in, C_out, 3, 3), bias (C_out,)
    weight = jax.random.normal(kw, (C_in, C_out, 3, 3), jnp.float32) * 0.1
    bias = jax.random.normal(kb, (C_out,), jnp.float32) * 0.1
    # BatchNorm2d affine parameters
    gamma = 1.0 + 0.1 * jax.random.normal(kg, (C_out,), jnp.float32)
    beta = 0.1 * jax.random.normal(kbe, (C_out,), jnp.float32)

    out = jax.block_until_ready(jax.jit(upconv_block)(x, weight, bias, gamma, beta))
    assert out.shape == (N, C_out, 2 * H, 2 * W), out.shape

    ref = jax.block_until_ready(reference(x, weight, bias, gamma, beta))
    # tolerance covers bf16-input rounding paths / f32 accumulation-order diffs
    assert jnp.allclose(out, ref, atol=1e-3, rtol=1e-3), float(jnp.max(jnp.abs(out - ref)))

    print("KERNEL_OK")
</pallas_src>

<mosaic_0001>
module attributes {stable_mosaic.version = 11 : i64} {
  func.func @conv_stats_kernel(%arg0: i32, %arg1: memref<32x16xbf16, #tpu.memory_space<vmem>>, %arg2: memref<16x256xbf16, #tpu.memory_space<vmem>>, %arg3: memref<32x1xf32, #tpu.memory_space<vmem>>, %arg4: memref<32x1xf32, #tpu.memory_space<vmem>>) attributes {dimension_semantics = [#tpu.dimension_semantics<arbitrary>], iteration_bounds = array<i64: 2>, scalar_prefetch = 0 : i64, scratch_operands = 0 : i64, tpu.core_type = #tpu.core_type<tc>, window_params = [{pipeline_mode = #tpu.pipeline_mode<synchronous>, transform_indices = @transform_0, window_bounds = array<i64: 32, 16>}, {transform_indices = @transform_1, window_bounds = array<i64: 16, 256>}, {pipeline_mode = #tpu.pipeline_mode<synchronous>, transform_indices = @transform_2, window_bounds = array<i64: 32, 1>}, {pipeline_mode = #tpu.pipeline_mode<synchronous>, transform_indices = @transform_3, window_bounds = array<i64: 32, 1>}]} {
    %c0_i32 = arith.constant 0 : i32
    %0 = arith.cmpi eq, %arg0, %c0_i32 : i32
    %1 = arith.extui %0 : i1 to i32
    %c0_i32_0 = arith.constant 0 : i32
    %2 = arith.cmpi ne, %1, %c0_i32_0 : i32
    scf.if %2 {
      %cst_14 = arith.constant 0.000000e+00 : f32
      %17 = vector.broadcast %cst_14 : f32 to vector<32x1xf32>
      %c0_15 = arith.constant 0 : index
      %c0_16 = arith.constant 0 : index
      %18 = vector.load %arg3[%c0_15, %c0_16] : memref<32x1xf32, #tpu.memory_space<vmem>>, vector<32x1xf32>
      tpu.vector_store %arg3[%c0_15, %c0_16], %17 {strides = array<i32>} : memref<32x1xf32, #tpu.memory_space<vmem>>, vector<32x1xf32>,
      %cst_17 = arith.constant 0.000000e+00 : f32
      %19 = vector.broadcast %cst_17 : f32 to vector<32x1xf32>
      %c0_18 = arith.constant 0 : index
      %c0_19 = arith.constant 0 : index
      %20 = vector.load %arg4[%c0_18, %c0_19] : memref<32x1xf32, #tpu.memory_space<vmem>>, vector<32x1xf32>
      tpu.vector_store %arg4[%c0_18, %c0_19], %19 {strides = array<i32>} : memref<32x1xf32, #tpu.memory_space<vmem>>, vector<32x1xf32>,
    } else {
    }
    %c0 = arith.constant 0 : index
    %c0_1 = arith.constant 0 : index
    %3 = vector.load %arg1[%c0, %c0_1] : memref<32x16xbf16, #tpu.memory_space<vmem>>, vector<32x16xbf16>
    %c0_2 = arith.constant 0 : index
    %c0_3 = arith.constant 0 : index
    %4 = vector.load %arg2[%c0_2, %c0_3] : memref<16x256xbf16, #tpu.memory_space<vmem>>, vector<16x256xbf16>
    %cst = arith.constant dense<0.000000e+00> : vector<32x256xf32>
    %5 = tpu.matmul %3, %4, %cst {dimension_numbers = #tpu.dot_dimension_numbers<[1], [0], [0], [1], [0, 0, 1, 1], [], []>} : vector<32x16xbf16>, vector<16x256xbf16>, vector<32x256xf32> -> vector<32x256xf32>
    %c0_4 = arith.constant 0 : index
    %c0_5 = arith.constant 0 : index
    %6 = vector.load %arg3[%c0_4, %c0_5] : memref<32x1xf32, #tpu.memory_space<vmem>>, vector<32x1xf32>
    %cst_6 = arith.constant dense<0.000000e+00> : vector<32xf32>
    %7 = vector.multi_reduction <add>, %5, %cst_6 [1] : vector<32x256xf32> to vector<32xf32>
    %8 = vector.shape_cast %7 : vector<32xf32> to vector<32x1xf32>
    %9 = arith.addf %6, %8 : vector<32x1xf32>
    %c0_7 = arith.constant 0 : index
    %c0_8 = arith.constant 0 : index
    %10 = vector.load %arg3[%c0_7, %c0_8] : memref<32x1xf32, #tpu.memory_space<vmem>>, vector<32x1xf32>
    tpu.vector_store %arg3[%c0_7, %c0_8], %9 {strides = array<i32>} : memref<32x1xf32, #tpu.memory_space<vmem>>, vector<32x1xf32>,
    %c0_9 = arith.constant 0 : index
    %c0_10 = arith.constant 0 : index
    %11 = vector.load %arg4[%c0_9, %c0_10] : memref<32x1xf32, #tpu.memory_space<vmem>>, vector<32x1xf32>
    %12 = arith.mulf %5, %5 : vector<32x256xf32>
    %cst_11 = arith.constant dense<0.000000e+00> : vector<32xf32>
    %13 = vector.multi_reduction <add>, %12, %cst_11 [1] : vector<32x256xf32> to vector<32xf32>
    %14 = vector.shape_cast %13 : vector<32xf32> to vector<32x1xf32>
    %15 = arith.addf %11, %14 : vector<32x1xf32>
    %c0_12 = arith.constant 0 : index
    %c0_13 = arith.constant 0 : index
    %16 = vector.load %arg4[%c0_12, %c0_13] : memref<32x1xf32, #tpu.memory_space<vmem>>, vector<32x1xf32>
    tpu.vector_store %arg4[%c0_12, %c0_13], %15 {strides = array<i32>} : memref<32x1xf32, #tpu.memory_space<vmem>>, vector<32x1xf32>,
    return
  }
  func.func @transform_0(%arg0: i32) -> (i32, i32) {
    %c0_i32 = arith.constant 0 : i32
    %c0_i32_0 = arith.constant 0 : i32
    %c0_i32_1 = arith.constant 0 : i32
    return %c0_i32, %c0_i32_0 : i32, i32
  }
  func.func @transform_1(%arg0: i32) -> (i32, i32) {
    %c0_i32 = arith.constant 0 : i32
    %c0_i32_0 = arith.constant 0 : i32
    return %c0_i32, %arg0 : i32, i32
  }
  func.func @transform_2(%arg0: i32) -> (i32, i32) {
    %c0_i32 = arith.constant 0 : i32
    %c0_i32_0 = arith.constant 0 : i32
    %c0_i32_1 = arith.constant 0 : i32
    return %c0_i32, %c0_i32_0 : i32, i32
  }
  func.func @transform_3(%arg0: i32) -> (i32, i32) {
    %c0_i32 = arith.constant 0 : i32
    %c0_i32_0 = arith.constant 0 : i32
    %c0_i32_1 = arith.constant 0 : i32
    return %c0_i32, %c0_i32_0 : i32, i32
  }
}

module attributes {stable_mosaic.version = 11 : i64} {
  func.func @conv_bn_relu_kernel(%arg0: i32, %arg1: memref<32x16xbf16, #tpu.memory_space<vmem>>, %arg2: memref<32x1xf32, #tpu.memory_space<vmem>>, %arg3: memref<32x1xf32, #tpu.memory_space<vmem>>, %arg4: memref<16x256xbf16, #tpu.memory_space<vmem>>, %arg5: memref<32x256xf32, #tpu.memory_space<vmem>>) attributes {dimension_semantics = [#tpu.dimension_semantics<parallel>], iteration_bounds = array<i64: 2>, scalar_prefetch = 0 : i64, scratch_operands = 0 : i64, tpu.core_type = #tpu.core_type<tc>, window_params = [{pipeline_mode = #tpu.pipeline_mode<synchronous>, transform_indices = @transform_0, window_bounds = array<i64: 32, 16>}, {pipeline_mode = #tpu.pipeline_mode<synchronous>, transform_indices = @transform_1, window_bounds = array<i64: 32, 1>}, {pipeline_mode = #tpu.pipeline_mode<synchronous>, transform_indices = @transform_2, window_bounds = array<i64: 32, 1>}, {transform_indices = @transform_3, window_bounds = array<i64: 16, 256>}, {transform_indices = @transform_4, window_bounds = array<i64: 32, 256>}]} {
    %c0 = arith.constant 0 : index
    %c0_0 = arith.constant 0 : index
    %0 = vector.load %arg1[%c0, %c0_0] : memref<32x16xbf16, #tpu.memory_space<vmem>>, vector<32x16xbf16>
    %c0_1 = arith.constant 0 : index
    %c0_2 = arith.constant 0 : index
    %1 = vector.load %arg4[%c0_1, %c0_2] : memref<16x256xbf16, #tpu.memory_space<vmem>>, vector<16x256xbf16>
    %cst = arith.constant dense<0.000000e+00> : vector<32x256xf32>
    %2 = tpu.matmul %0, %1, %cst {dimension_numbers = #tpu.dot_dimension_numbers<[1], [0], [0], [1], [0, 0, 1, 1], [], []>} : vector<32x16xbf16>, vector<16x256xbf16>, vector<32x256xf32> -> vector<32x256xf32>
    %c0_3 = arith.constant 0 : index
    %c0_4 = arith.constant 0 : index
    %3 = vector.load %arg2[%c0_3, %c0_4] : memref<32x1xf32, #tpu.memory_space<vmem>>, vector<32x1xf32>
    %4 = vector.broadcast %3 : vector<32x1xf32> to vector<32x256xf32>
    %5 = arith.mulf %2, %4 : vector<32x256xf32>
    %c0_5 = arith.constant 0 : index
    %c0_6 = arith.constant 0 : index
    %6 = vector.load %arg3[%c0_5, %c0_6] : memref<32x1xf32, #tpu.memory_space<vmem>>, vector<32x1xf32>
    %7 = vector.broadcast %6 : vector<32x1xf32> to vector<32x256xf32>
    %8 = arith.addf %5, %7 : vector<32x256xf32>
    %cst_7 = arith.constant 0.000000e+00 : f32
    %9 = vector.broadcast %cst_7 : f32 to vector<32x256xf32>
    %10 = arith.maximumf %8, %9 : vector<32x256xf32>
    %c0_8 = arith.constant 0 : index
    %c0_9 = arith.constant 0 : index
    %11 = vector.load %arg5[%c0_8, %c0_9] : memref<32x256xf32, #tpu.memory_space<vmem>>, vector<32x256xf32>
    tpu.vector_store %arg5[%c0_8, %c0_9], %10 {strides = array<i32>} : memref<32x256xf32, #tpu.memory_space<vmem>>, vector<32x256xf32>,
    return
  }
  func.func @transform_0(%arg0: i32) -> (i32, i32) {
    %c0_i32 = arith.constant 0 : i32
    %c0_i32_0 = arith.constant 0 : i32
    %c0_i32_1 = arith.constant 0 : i32
    return %c0_i32, %c0_i32_0 : i32, i32
  }
  func.func @transform_1(%arg0: i32) -> (i32, i32) {
    %c0_i32 = arith.constant 0 : i32
    %c0_i32_0 = arith.constant 0 : i32
    %c0_i32_1 = arith.constant 0 : i32
    return %c0_i32, %c0_i32_0 : i32, i32
  }
  func.func @transform_2(%arg0: i32) -> (i32, i32) {
    %c0_i32 = arith.constant 0 : i32
    %c0_i32_0 = arith.constant 0 : i32
    %c0_i32_1 = arith.constant 0 : i32
    return %c0_i32, %c0_i32_0 : i32, i32
  }
  func.func @transform_3(%arg0: i32) -> (i32, i32) {
    %c0_i32 = arith.constant 0 : i32
    %c0_i32_0 = arith.constant 0 : i32
    return %c0_i32, %arg0 : i32, i32
  }
  func.func @transform_4(%arg0: i32) -> (i32, i32) {
    %c0_i32 = arith.constant 0 : i32
    %c0_i32_0 = arith.constant 0 : i32
    return %c0_i32, %arg0 : i32, i32
  }
}

</mosaic_0001>

<llo_original>
// kernel: upconv_block.2
$region0: #{upconv_block.2}
  #allocation0 [shape = 'u32[]', space=smem, size = 0x4, offset = 0x4, fixed_abs, tag = 'smem constant byte address 0x4 - core index']
  #allocation1 [shape = 'u32[144,128]{1,0:T(1,128)}', space=vmem, size = 0x12000, scoped, tag = 'internal scratch']
  %s0 = inlined_call_operand.vmem [shape: bf16[32,16], index: 0, kind: input, shape index: {}]
  %s1 = inlined_call_operand.vmem [shape: bf16[16,512], index: 1, kind: input, shape index: {}]
  %s2 = inlined_call_operand.vmem [shape: f32[32,1], index: 2, kind: output, shape index: {0}]
  %s3 = inlined_call_operand.vmem [shape: f32[32,1], index: 3, kind: output, shape index: {1}]
  %4 = xla_tuple %s2, %s3
  %s5 = sld [smem:[#allocation0]]
  $region91: #{upconv_block.2} parent=0
    _
  %s7 = ssub.s32 1, %s5
  %s8 = scalar_select 0, %s7, %s5
  $region1: #{upconv_block.2} parent=0
    #allocation2 [shape = 'u8[16384]{0}', space=vmem, size = 0x4000, scoped, tag = 'input window, operand 1']
    loop: start=0, step=1, limit=4
    $region2: #{upconv_block.2} parent=1 // loop_pre_header
      _
    $region3: #{upconv_block.2} parent=1 // loop_header
      %s10 = sphi 0, %s14
      %p11 = scmp.ge.s32.totalorder %s10, 4
      %s18 = sphi 0, %s18
      %s20 = sphi 0, %s18
      %s21 = sphi 0, %s20
      %s35 = sphi 0, %s21
      %s41 = sphi 0, %s43
      %s44 = sphi 0, %s41
      %s45 = sphi 0, %s44
      %s61 = sphi 0, %s45
      %s65 = sphi 0, %s65
      %s67 = sphi 0, %s65
      %s68 = sphi 0, %s67
      %s82 = sphi 0, %s68
      %s86 = sphi 0, %s86
      %s88 = sphi 0, %s86
      %s89 = sphi 0, %s88
      %s103 = sphi 0, %s89
    $region4: #{upconv_block.2} parent=1 // loop_header_branch
      %13 = sbr.rel (%p11) target = $region8
    $region5: #{upconv_block.2} parent=1 // loop_body
      %s15 = ssub.s32 %s10, 1
      %s16 = ssub.s32 %s10, 2
      %s17 = sadd.s32 %s10, 1
      %s19 = sadd.s32 %s18, 1
      %p22 = scmp.eq.s32.totalorder %s10, 1
      %p23 = scmp.ne.s32.totalorder %s18, %s20
      %p24 = scmp.eq.s32.totalorder %s10, 0
      %p25 = por %p23, %p24
      %p26 = scmp.ne.s32.totalorder %s18, %s20
      %p27 = scmp.eq.s32.totalorder %s15, 1
      %p28 = por %p26, %p27
      %p29 = scmp.ne.s32.totalorder %s20, %s21
      %p30 = scmp.eq.s32.totalorder %s15, 0
      %p31 = por %p29, %p30
      %p32 = scmp.ne.s32.totalorder %s20, %s21
      %p33 = scmp.eq.s32.totalorder %s16, 1
      %p34 = por %p32, %p33
      %p36 = scmp.ne.s32.totalorder %s21, %s35
      %p37 = scmp.eq.s32.totalorder %s16, 0
      %p38 = por %p36, %p37
      %s39 = ssub.s32 %s10, %s17
      %p40 = scmp.eq.s32.totalorder %s39, 0
      %s42 = sadd.s32 %s41, 1
      %s43 = scalar_select %p40, %s41, %s42
      %p46 = pneg %p40
      %p47 = scmp.eq.s32.totalorder %s10, 1
      %p48 = por %p46, %p47
      %p49 = scmp.ne.s32.totalorder %s41, %s44
      %p50 = scmp.eq.s32.totalorder %s10, 0
      %p51 = por %p49, %p50
      %p52 = scmp.ne.s32.totalorder %s41, %s44
      %p53 = scmp.eq.s32.totalorder %s15, 1
      %p54 = por %p52, %p53
      %p55 = scmp.ne.s32.totalorder %s44, %s45
      %p56 = scmp.eq.s32.totalorder %s15, 0
      %p57 = por %p55, %p56
      %p58 = scmp.ne.s32.totalorder %s44, %s45
      %p59 = scmp.eq.s32.totalorder %s16, 1
      %p60 = por %p58, %p59
      %p62 = scmp.ne.s32.totalorder %s45, %s61
      %p63 = scmp.eq.s32.totalorder %s16, 0
      %p64 = por %p62, %p63
      %s66 = sadd.s32 %s65, 1
      %p69 = scmp.eq.s32.totalorder %s10, 1
      %p70 = scmp.ne.s32.totalorder %s65, %s67
      %p71 = scmp.eq.s32.totalorder %s10, 0
      %p72 = por %p70, %p71
      %p73 = scmp.ne.s32.totalorder %s65, %s67
      %p74 = scmp.eq.s32.totalorder %s15, 1
      %p75 = por %p73, %p74
      %p76 = scmp.ne.s32.totalorder %s67, %s68
      %p77 = scmp.eq.s32.totalorder %s15, 0
      %p78 = por %p76, %p77
      %p79 = scmp.ne.s32.totalorder %s67, %s68
      %p80 = scmp.eq.s32.totalorder %s16, 1
      %p81 = por %p79, %p80
      %p83 = scmp.ne.s32.totalorder %s68, %s82
      %p84 = scmp.eq.s32.totalorder %s16, 0
      %p85 = por %p83, %p84
      %s87 = sadd.s32 %s86, 1
      %p90 = scmp.eq.s32.totalorder %s10, 1
      %p91 = scmp.ne.s32.totalorder %s86, %s88
      %p92 = scmp.eq.s32.totalorder %s10, 0
      %p93 = por %p91, %p92
      %p94 = scmp.ne.s32.totalorder %s86, %s88
      %p95 = scmp.eq.s32.totalorder %s15, 1
      %p96 = por %p94, %p95
      %p97 = scmp.ne.s32.totalorder %s88, %s89
      %p98 = scmp.eq.s32.totalorder %s15, 0
      %p99 = por %p97, %p98
      %p100 = scmp.ne.s32.totalorder %s88, %s89
      %p101 = scmp.eq.s32.totalorder %s16, 1
      %p102 = por %p100, %p101
      %p104 = scmp.ne.s32.totalorder %s89, %s103
      %p105 = scmp.eq.s32.totalorder %s16, 0
      %p106 = por %p104, %p105
      %p107 = scmp.le.s32.totalorder 1, %s10
      %p108 = scmp.lt.s32.totalorder %s10, 3
      %p109 = pnand %p107, %p108
      %p110 = pneg %p109
      // Predicated region
      $region9: #{upconv_block.2} parent=5 // pred_check
        _
      $region10: #{upconv_block.2} parent=5 // pred_check_branch
        %112 = sbr.rel (%p109) target = $region12
      $region11: #{upconv_block.2} parent=5 // pred_region
        %s113 = ssub.s32 %s10, 1
        // Predicated region
        $region13: #{upconv_block.2} parent=11 // pred_check
          %p114 = pneg %p31
        $region14: #{upconv_block.2} parent=11 // pred_check_branch
          %116 = sbr.rel (%p114) target = $region16
        $region15: #{upconv_block.2} parent=11 // pred_region
          _
        $region16: #{upconv_block.2} parent=11 // pred_fallthru
          _
      $region12: #{upconv_block.2} parent=5 // pred_fallthru
        _
      %p117 = scmp.lt.s32.totalorder %s10, 2
      // Predicated region
      $region17: #{upconv_block.2} parent=5 // pred_check
        %p118 = pneg %p117
      $region18: #{upconv_block.2} parent=5 // pred_check_branch
        %120 = sbr.rel (%p118) target = $region20
      $region19: #{upconv_block.2} parent=5 // pred_region
        // Predicated region
        $region21: #{upconv_block.2} parent=19 // pred_check
          %p121 = pneg %p51
        $region22: #{upconv_block.2} parent=19 // pred_check_branch
          %123 = sbr.rel (%p121) target = $region24
        $region23: #{upconv_block.2} parent=19 // pred_region
          %s124 = sand.u32 %s41, 1
          %s125 = sand.u32 %s41, 1
          %s126 = smul.addr %s125, 16
          %s127 = scalar_lea.vmem [#allocation2], %s126
          %s128 = smul.u32 2, %s10
          %s129 = smul.addr %s128, 4
          %s130 = scalar_lea.vmem %s1, %s129
          // Predicated region
          $region25: #{upconv_block.2} parent=23 // pred_check
            _
          $region26: #{upconv_block.2} parent=23 // pred_check_branch
            %132 = sbr.rel (0) target = $region28
          $region27: #{upconv_block.2} parent=23 // pred_region
            // Predicated region
            $region29: #{upconv_block.2} parent=27 // pred_check
              _
            $region30: #{upconv_block.2} parent=27 // pred_check_branch
              %134 = sbr.rel (0) target = $region32
            $region31: #{upconv_block.2} parent=27 // pred_region
              // Predicated region
              $region44: #{upconv_block.2} parent=31 // pred_check
                _
              $region45: #{upconv_block.2} parent=31 // pred_check_branch
                %151 = sbr.rel (0) target = $region47
              $region46: #{upconv_block.2} parent=31 // pred_region
                loop: start=0, step=1, limit=1
                $region48: #{upconv_block.2} parent=46 // loop_pre_header
                  _
                $region49: #{upconv_block.2} parent=46 // loop_header
                  %s153 = sphi 0, %s157
                  %p154 = scmp.ge.s32.totalorder %s153, 1
                  %s158 = sphi %s130, %s130
                  %s159 = sphi %s127, %s127
                $region50: #{upconv_block.2} parent=46 // loop_header_branch
                  %156 = sbr.rel (%p154) target = $region54
                $region51: #{upconv_block.2} parent=46 // loop_body
                  %v160 = vld [vmem:[%s158] sm:$0xff]
                  %161 = vst [vmem:[%s159] sm:$0xff] %v160
                  %v162 = vld [vmem:[%s158 + $0x10] sm:$0xff]
                  %163 = vst [vmem:[%s159 + $0x8] sm:$0xff] %v162
                $region52: #{upconv_block.2} parent=46 // loop_footer
                  %s157 = sadd.s32 1, %s153
                $region53: #{upconv_block.2} parent=46 // loop_footer_branch
                  %152 = sbr.rel target = $region49
                $region54: #{upconv_block.2} parent=46 // loop_exit
                  _
              $region47: #{upconv_block.2} parent=31 // pred_fallthru
                _
              // Predicated region
              $region55: #{upconv_block.2} parent=31 // pred_check
                _
              $region56: #{upconv_block.2} parent=31 // pred_check_branch
                %165 = sbr.rel target = $region58
              $region57: #{upconv_block.2} parent=31 // pred_region
                _
              $region58: #{upconv_block.2} parent=31 // pred_fallthru
                _
            $region32: #{upconv_block.2} parent=27 // pred_fallthru
              _
            // Predicated region
            $region33: #{upconv_block.2} parent=27 // pred_check
              _
            $region34: #{upconv_block.2} parent=27 // pred_check_branch
              %136 = sbr.rel target = $region36
            $region35: #{upconv_block.2} parent=27 // pred_region
              loop: start=0, step=1, limit=1
              $region37: #{upconv_block.2} parent=35 // loop_pre_header
                _
              $region38: #{upconv_block.2} parent=35 // loop_header
                %s139 = sphi 0, %s143
                %p140 = scmp.ge.s32.totalorder %s139, 1
                %s144 = sphi %s130, %s130
                %s145 = sphi %s127, %s127
              $region39: #{upconv_block.2} parent=35 // loop_header_branch
                %142 = sbr.rel (%p140) target = $region43
              $region40: #{upconv_block.2} parent=35 // loop_body
                %v146 = vld [vmem:[%s144] sm:$0xff]
                %147 = vst [vmem:[%s145] sm:$0xff] %v146
                %v148 = vld [vmem:[%s144 + $0x10] sm:$0xff]
                %149 = vst [vmem:[%s145 + $0x8] sm:$0xff] %v148
              $region41: #{upconv_block.2} parent=35 // loop_footer
                %s143 = sadd.s32 1, %s139
              $region42: #{upconv_block.2} parent=35 // loop_footer_branch
                %138 = sbr.rel target = $region38
              $region43: #{upconv_block.2} parent=35 // loop_exit
                _
            $region36: #{upconv_block.2} parent=27 // pred_fallthru
              _
          $region28: #{upconv_block.2} parent=23 // pred_fallthru
            _
          %166 = vnop
        $region24: #{upconv_block.2} parent=19 // pred_fallthru
          _
      $region20: #{upconv_block.2} parent=5 // pred_fallthru
        _
      %p167 = scmp.le.s32.totalorder 1, %s10
      %p168 = scmp.lt.s32.totalorder %s10, 3
      %p169 = pnand %p167, %p168
      %p170 = pneg %p169
      // Predicated region
      $region59: #{upconv_block.2} parent=5 // pred_check
        _
      $region60: #{upconv_block.2} parent=5 // pred_check_branch
        %172 = sbr.rel (%p169) target = $region62
      $region61: #{upconv_block.2} parent=5 // pred_region
        %s173 = ssub.s32 %s10, 1
        %s174 = sand.u32 %s44, 1
        %s175 = sand.u32 %s44, 1
        %s176 = smul.addr %s175, 16
        %s177 = scalar_lea.vmem [#allocation2], %s176
        // Predicated region
        $region63: #{upconv_block.2} parent=61 // pred_check
          %p178 = pneg %p57
        $region64: #{upconv_block.2} parent=61 // pred_check_branch
          %180 = sbr.rel (%p178) target = $region66
        $region65: #{upconv_block.2} parent=61 // pred_region
          _
        $region66: #{upconv_block.2} parent=61 // pred_fallthru
          _
        %p181 = pneg %p31
        %p182 = pneg %p28
        %s183 = sand.u32 %s44, 1
        %s184 = sand.u32 %s44, 1
        %s185 = smul.addr %s184, 16
        %s186 = scalar_lea.vmem [#allocation2], %s185
        %p187 = pneg %p57
        %p188 = pneg %p54
        %p189 = pneg %p78
        %p190 = pneg %p75
        %p191 = pneg %p99
        %p192 = pneg %p96
        %s193 = smul.u32 2, %s15
        %p195 = scmp.eq.s32.totalorder %s15, 0
        // Predicated region
        $region67: #{upconv_block.2} parent=61 // pred_check
          %p196 = pneg %p195
        $region68: #{upconv_block.2} parent=61 // pred_check_branch
          %198 = sbr.rel (%p196) target = $region70
        $region69: #{upconv_block.2} parent=61 // pred_region
          %vm199 = vcmask 7168
          %200 = vst.msk [vmem:[%s2] sm:$0xff] %vm199, 0.0
          %201 = vst.msk [vmem:[%s2 + $0x8] sm:$0xff] %vm199, 0.0
          %202 = vst.msk [vmem:[%s2 + $0x10] sm:$0xff] %vm199, 0.0
          %203 = vst.msk [vmem:[%s2 + $0x18] sm:$0xff] %vm199, 0.0
          %204 = vst.msk [vmem:[%s3] sm:$0xff] %vm199, 0.0
          %205 = vst.msk [vmem:[%s3 + $0x8] sm:$0xff] %vm199, 0.0
          %206 = vst.msk [vmem:[%s3 + $0x10] sm:$0xff] %vm199, 0.0
          %207 = vst.msk [vmem:[%s3 + $0x18] sm:$0xff] %vm199, 0.0
        $region70: #{upconv_block.2} parent=61 // pred_fallthru
          _
        %v208 = vld [vmem:[%s0] sm:$0xf]
        %v209 = vld [vmem:[%s0 + $0x4] sm:$0xf]
        %v210 = vld [vmem:[%s0 + $0x8] sm:$0xf]
        %v211 = vld [vmem:[%s0 + $0xc] sm:$0xf]
        %v212 = vld [vmem:[%s177] sm:$0xff]
        %v213 = vld [vmem:[%s177 + $0x8] sm:$0xff]
        %v218 = vunpack.c.l.b16 %v208
        %v219 = vunpack.c.l.b16 %v209
        %v220 = vunpack.c.l.b16 %v210
        %v221 = vunpack.c.l.b16 %v211
        %v222 = vpack.c.b16 %v219, %v218
        %v223 = vpack.c.b16 %v221, %v220
        %v226 = vunpack.c.l.b16 %v212
        %v227 = vunpack.c.h.b16 %v212
        %v228 = vunpack.c.l.b16 %v213
        %v229 = vunpack.c.h.b16 %v213
        %v230 = vpack.c.b16 %v228, %v226
        %v231 = vpack.c.b16 %v229, %v227
        %vm234 = vcmask 130048
        %v236 = vsel %vm234, %v222, 0
        %v239 = vsel %vm234, %v223, 0
        %241 = vmatprep.subr.bf16.mxu0 %v231
        %242 = vmatpush1.bf16.msra.mxu0 %v230
        %243 = vmatprep.subr.bf16.mxu0 0
        %244 = vmatpush1.bf16.msra.mxu0 0
        %245 = vmatprep.subr.bf16.mxu0 0
        %246 = vmatpush1.bf16.msra.mxu0 0
        %247 = vmatprep.subr.bf16.mxu0 0
        %248 = vmatpush1.bf16.msra.mxu0 0
        %249 = vmatprep.subr.bf16.mxu0 0
        %250 = vmatpush1.bf16.msra.mxu0 0
        %251 = vmatprep.subr.bf16.mxu0 0
        %252 = vmatpush1.bf16.msra.mxu0 0
        %253 = vmatprep.subr.bf16.mxu0 0
        %254 = vmatpush1.bf16.msra.mxu0 0
        %255 = vmatprep.subr.bf16.mxu0 0
        %256 = vmatpush1.bf16.msra.mxu0 0
        %257 = vmatprep.subr.bf16.mxu0 0
        %258 = vmatpush1.bf16.msra.mxu0 0
        %259 = vmatprep.subr.bf16.mxu0 0
        %260 = vmatpush1.bf16.msra.mxu0 0
        %261 = vmatprep.subr.bf16.mxu0 0
        %262 = vmatpush1.bf16.msra.mxu0 0
        %263 = vmatprep.subr.bf16.mxu0 0
        %264 = vmatpush1.bf16.msra.mxu0 0
        %265 = vmatprep.subr.bf16.mxu0 0
        %266 = vmatpush1.bf16.msra.mxu0 0
        %267 = vmatprep.subr.bf16.mxu0 0
        %268 = vmatpush1.bf16.msra.mxu0 0
        %269 = vmatprep.subr.bf16.mxu0 0
        %270 = vmatpush1.bf16.msra.mxu0 0
        %271 = vmatprep.subr.bf16.mxu0 0
        %272 = vmatpush1.bf16.msra.mxu0 0
        %273 = vmatprep.mubr.bf16.mxu0 0
        %274 = vmatmul.mubr.bf16.gmra.mrb[0].mxu0 %v236
        %v275 = vpop.f32.mrb[0].mxu0
        %v276 = vadd.f32 0.0, %v275
        %v277 = vpop.f32.mrb[0].mxu0
        %v278 = vadd.f32 0.0, %v277
        %v279 = vpop.f32.mrb[0].mxu0
        %v280 = vadd.f32 0.0, %v279
        %v281 = vpop.f32.mrb[0].mxu0
        %v282 = vadd.f32 0.0, %v281
        %283 = vmatprep.mubr.bf16.mxu0 0
        %284 = vmatmul.mubr.bf16.gmra.mrb[0].mxu0 %v239
        %v285 = vpop.f32.mrb[0].mxu0
        %v286 = vadd.f32 0.0, %v285
        %v287 = vpop.f32.mrb[0].mxu0
        %v288 = vadd.f32 0.0, %v287
        %v289 = vpop.f32.mrb[0].mxu0
        %v290 = vadd.f32 0.0, %v289
        %v291 = vpop.f32.mrb[0].mxu0
        %v292 = vadd.f32 0.0, %v291
        %293 = vdwg.mxu0
        %v294 = vld [vmem:[%s2] sm:$0xff]
        %v295 = vld [vmem:[%s2 + $0x8] sm:$0xff]
        %v296 = vld [vmem:[%s2 + $0x10] sm:$0xff]
        %v297 = vld [vmem:[%s2 + $0x18] sm:$0xff]
        %v298 = vadd.f32 %v276, %v278
        %299 = vadd.xlane.f32.xlu0 %v298
        %v300 = vpop.xlane.xlu0 %299
        %v301 = vadd.f32 %v280, %v282
        %302 = vadd.xlane.f32.xlu0 %v301
        %v303 = vpop.xlane.xlu0 %302
        %v304 = vadd.f32 %v286, %v288
        %305 = vadd.xlane.f32.xlu0 %v304
        %v306 = vpop.xlane.xlu0 %305
        %v307 = vadd.f32 %v290, %v292
        %308 = vadd.xlane.f32.xlu0 %v307
        %v309 = vpop.xlane.xlu0 %308
        %v310 = vadd.f32 %v294, %v300
        %v311 = vadd.f32 %v295, %v303
        %v312 = vadd.f32 %v296, %v306
        %v313 = vadd.f32 %v297, %v309
        %vm314 = vcmask 7168
        %315 = vst.msk [vmem:[%s2] sm:$0xff] %vm314, %v310
        %316 = vst.msk [vmem:[%s2 + $0x8] sm:$0xff] %vm314, %v311
        %317 = vst.msk [vmem:[%s2 + $0x10] sm:$0xff] %vm314, %v312
        %318 = vst.msk [vmem:[%s2 + $0x18] sm:$0xff] %vm314, %v313
        %v319 = vld [vmem:[%s3] sm:$0xff]
        %v320 = vld [vmem:[%s3 + $0x8] sm:$0xff]
        %v321 = vld [vmem:[%s3 + $0x10] sm:$0xff]
        %v322 = vld [vmem:[%s3 + $0x18] sm:$0xff]
        %v323 = vmul.f32 %v276, %v276
        %v324 = vmul.f32 %v278, %v278
        %v325 = vmul.f32 %v280, %v280
        %v326 = vmul.f32 %v282, %v282
        %v327 = vmul.f32 %v286, %v286
        %v328 = vmul.f32 %v288, %v288
        %v329 = vmul.f32 %v290, %v290
        %v330 = vmul.f32 %v292, %v292
        %v331 = vadd.f32 %v323, %v324
        %332 = vadd.xlane.f32.xlu0 %v331
        %v333 = vpop.xlane.xlu0 %332
        %v334 = vadd.f32 %v325, %v326
        %335 = vadd.xlane.f32.xlu0 %v334
        %v336 = vpop.xlane.xlu0 %335
        %v337 = vadd.f32 %v327, %v328
        %338 = vadd.xlane.f32.xlu0 %v337
        %v339 = vpop.xlane.xlu0 %338
        %v340 = vadd.f32 %v329, %v330
        %341 = vadd.xlane.f32.xlu0 %v340
        %v342 = vpop.xlane.xlu0 %341
        %v343 = vadd.f32 %v319, %v333
        %v344 = vadd.f32 %v320, %v336
        %v345 = vadd.f32 %v321, %v339
        %v346 = vadd.f32 %v322, %v342
        %347 = vst.msk [vmem:[%s3] sm:$0xff] %vm314, %v343
        %348 = vst.msk [vmem:[%s3 + $0x8] sm:$0xff] %vm314, %v344
        %349 = vst.msk [vmem:[%s3 + $0x10] sm:$0xff] %vm314, %v345
        %350 = vst.msk [vmem:[%s3 + $0x18] sm:$0xff] %vm314, %v346
        // Predicated region
        $region71: #{upconv_block.2} parent=61 // pred_check
          %p351 = pneg %p75
        $region72: #{upconv_block.2} parent=61 // pred_check_branch
          %353 = sbr.rel (%p351) target = $region74
        $region73: #{upconv_block.2} parent=61 // pred_region
          _
        $region74: #{upconv_block.2} parent=61 // pred_fallthru
          _
        // Predicated region
        $region75: #{upconv_block.2} parent=61 // pred_check
          %p354 = pneg %p96
        $region76: #{upconv_block.2} parent=61 // pred_check_branch
          %356 = sbr.rel (%p354) target = $region78
        $region77: #{upconv_block.2} parent=61 // pred_region
          _
        $region78: #{upconv_block.2} parent=61 // pred_fallthru
          _
        // Predicated region
        $region79: #{upconv_block.2} parent=61 // pred_check
          %p357 = pneg %p75
        $region80: #{upconv_block.2} parent=61 // pred_check_branch
          %359 = sbr.rel (%p357) target = $region82
        $region81: #{upconv_block.2} parent=61 // pred_region
          _
        $region82: #{upconv_block.2} parent=61 // pred_fallthru
          _
        // Predicated region
        $region83: #{upconv_block.2} parent=61 // pred_check
          %p360 = pneg %p96
        $region84: #{upconv_block.2} parent=61 // pred_check_branch
          %362 = sbr.rel (%p360) target = $region86
        $region85: #{upconv_block.2} parent=61 // pred_region
          _
        $region86: #{upconv_block.2} parent=61 // pred_fallthru
          _
      $region62: #{upconv_block.2} parent=5 // pred_fallthru
        _
      %p363 = scmp.le.s32.totalorder 2, %s10
      // Predicated region
      $region87: #{upconv_block.2} parent=5 // pred_check
        %p364 = pneg %p363
      $region88: #{upconv_block.2} parent=5 // pred_check_branch
        %366 = sbr.rel (%p364) target = $region90
      $region89: #{upconv_block.2} parent=5 // pred_region
        %s367 = ssub.s32 %s10, 2
      $region90: #{upconv_block.2} parent=5 // pred_fallthru
        _
    $region6: #{upconv_block.2} parent=1 // loop_footer
      %s14 = sadd.s32 1, %s10
    $region7: #{upconv_block.2} parent=1 // loop_footer_branch
      %9 = sbr.rel target = $region3
    $region8: #{upconv_block.2} parent=1 // loop_exit
      _

// kernel: upconv_block.3
$region0: #{upconv_block.3}
  #allocation0 [shape = 'u32[]', space=smem, size = 0x4, offset = 0x4, fixed_abs, tag = 'smem constant byte address 0x4 - core index']
  #allocation1 [shape = 'u32[144,128]{1,0:T(1,128)}', space=vmem, size = 0x12000, scoped, tag = 'internal scratch']
  %s0 = inlined_call_operand.vmem [shape: bf16[32,16], index: 0, kind: input, shape index: {}]
  %s1 = inlined_call_operand.vmem [shape: f32[32,1], index: 1, kind: input, shape index: {}]
  %s2 = inlined_call_operand.vmem [shape: f32[32,1], index: 2, kind: input, shape index: {}]
  %s3 = inlined_call_operand.vmem [shape: bf16[16,512], index: 3, kind: input, shape index: {}]
  %s4 = inlined_call_operand.vmem [shape: f32[32,512], index: 4, kind: output, shape index: {}]
  %s5 = sld [smem:[#allocation0]]
  $region106: #{upconv_block.3} parent=0
    _
  %s7 = ssub.s32 1, %s5
  %s8 = scalar_select 0, %s7, %s5
  $region1: #{upconv_block.3} parent=0
    #allocation2 [shape = 'u8[16384]{0}', space=vmem, size = 0x4000, scoped, tag = 'input window, operand 3']
    #allocation3 [shape = 'u8[65536]{0}', space=vmem, size = 0x10000, scoped, tag = 'output window, operand 0']
    loop: start=0, step=1, limit=4
    $region2: #{upconv_block.3} parent=1 // loop_pre_header
      _
    $region3: #{upconv_block.3} parent=1 // loop_header
      %s10 = sphi 0, %s14
      %p11 = scmp.ge.s32.totalorder %s10, 4
      %s18 = sphi 0, %s18
      %s20 = sphi 0, %s18
      %s21 = sphi 0, %s20
      %s35 = sphi 0, %s21
      %s39 = sphi 0, %s39
      %s41 = sphi 0, %s39
      %s42 = sphi 0, %s41
      %s56 = sphi 0, %s42
      %s60 = sphi 0, %s60
      %s62 = sphi 0, %s60
      %s63 = sphi 0, %s62
      %s77 = sphi 0, %s63
      %s83 = sphi 0, %s85
      %s86 = sphi 0, %s83
      %s87 = sphi 0, %s86
      %s103 = sphi 0, %s87
      %s109 = sphi 0, %s111
      %s112 = sphi 0, %s109
      %s113 = sphi 0, %s112
      %s129 = sphi 0, %s113
    $region4: #{upconv_block.3} parent=1 // loop_header_branch
      %13 = sbr.rel (%p11) target = $region8
    $region5: #{upconv_block.3} parent=1 // loop_body
      %s15 = ssub.s32 %s10, 1
      %s16 = ssub.s32 %s10, 2
      %s17 = sadd.s32 %s10, 1
      %s19 = sadd.s32 %s18, 1
      %p22 = scmp.eq.s32.totalorder %s10, 1
      %p23 = scmp.ne.s32.totalorder %s18, %s20
      %p24 = scmp.eq.s32.totalorder %s10, 0
      %p25 = por %p23, %p24
      %p26 = scmp.ne.s32.totalorder %s18, %s20
      %p27 = scmp.eq.s32.totalorder %s15, 1
      %p28 = por %p26, %p27
      %p29 = scmp.ne.s32.totalorder %s20, %s21
      %p30 = scmp.eq.s32.totalorder %s15, 0
      %p31 = por %p29, %p30
      %p32 = scmp.ne.s32.totalorder %s20, %s21
      %p33 = scmp.eq.s32.totalorder %s16, 1
      %p34 = por %p32, %p33
      %p36 = scmp.ne.s32.totalorder %s21, %s35
      %p37 = scmp.eq.s32.totalorder %s16, 0
      %p38 = por %p36, %p37
      %s40 = sadd.s32 %s39, 1
      %p43 = scmp.eq.s32.totalorder %s10, 1
      %p44 = scmp.ne.s32.totalorder %s39, %s41
      %p45 = scmp.eq.s32.totalorder %s10, 0
      %p46 = por %p44, %p45
      %p47 = scmp.ne.s32.totalorder %s39, %s41
      %p48 = scmp.eq.s32.totalorder %s15, 1
      %p49 = por %p47, %p48
      %p50 = scmp.ne.s32.totalorder %s41, %s42
      %p51 = scmp.eq.s32.totalorder %s15, 0
      %p52 = por %p50, %p51
      %p53 = scmp.ne.s32.totalorder %s41, %s42
      %p54 = scmp.eq.s32.totalorder %s16, 1
      %p55 = por %p53, %p54
      %p57 = scmp.ne.s32.totalorder %s42, %s56
      %p58 = scmp.eq.s32.totalorder %s16, 0
      %p59 = por %p57, %p58
      %s61 = sadd.s32 %s60, 1
      %p64 = scmp.eq.s32.totalorder %s10, 1
      %p65 = scmp.ne.s32.totalorder %s60, %s62
      %p66 = scmp.eq.s32.totalorder %s10, 0
      %p67 = por %p65, %p66
      %p68 = scmp.ne.s32.totalorder %s60, %s62
      %p69 = scmp.eq.s32.totalorder %s15, 1
      %p70 = por %p68, %p69
      %p71 = scmp.ne.s32.totalorder %s62, %s63
      %p72 = scmp.eq.s32.totalorder %s15, 0
      %p73 = por %p71, %p72
      %p74 = scmp.ne.s32.totalorder %s62, %s63
      %p75 = scmp.eq.s32.totalorder %s16, 1
      %p76 = por %p74, %p75
      %p78 = scmp.ne.s32.totalorder %s63, %s77
      %p79 = scmp.eq.s32.totalorder %s16, 0
      %p80 = por %p78, %p79
      %s81 = ssub.s32 %s10, %s17
      %p82 = scmp.eq.s32.totalorder %s81, 0
      %s84 = sadd.s32 %s83, 1
      %s85 = scalar_select %p82, %s83, %s84
      %p88 = pneg %p82
      %p89 = scmp.eq.s32.totalorder %s10, 1
      %p90 = por %p88, %p89
      %p91 = scmp.ne.s32.totalorder %s83, %s86
      %p92 = scmp.eq.s32.totalorder %s10, 0
      %p93 = por %p91, %p92
      %p94 = scmp.ne.s32.totalorder %s83, %s86
      %p95 = scmp.eq.s32.totalorder %s15, 1
      %p96 = por %p94, %p95
      %p97 = scmp.ne.s32.totalorder %s86, %s87
      %p98 = scmp.eq.s32.totalorder %s15, 0
      %p99 = por %p97, %p98
      %p100 = scmp.ne.s32.totalorder %s86, %s87
      %p101 = scmp.eq.s32.totalorder %s16, 1
      %p102 = por %p100, %p101
      %p104 = scmp.ne.s32.totalorder %s87, %s103
      %p105 = scmp.eq.s32.totalorder %s16, 0
      %p106 = por %p104, %p105
      %s107 = ssub.s32 %s10, %s17
      %p108 = scmp.eq.s32.totalorder %s107, 0
      %s110 = sadd.s32 %s109, 1
      %s111 = scalar_select %p108, %s109, %s110
      %p114 = pneg %p108
      %p115 = scmp.eq.s32.totalorder %s10, 1
      %p116 = por %p114, %p115
      %p117 = scmp.ne.s32.totalorder %s109, %s112
      %p118 = scmp.eq.s32.totalorder %s10, 0
      %p119 = por %p117, %p118
      %p120 = scmp.ne.s32.totalorder %s109, %s112
      %p121 = scmp.eq.s32.totalorder %s15, 1
      %p122 = por %p120, %p121
      %p123 = scmp.ne.s32.totalorder %s112, %s113
      %p124 = scmp.eq.s32.totalorder %s15, 0
      %p125 = por %p123, %p124
      %p126 = scmp.ne.s32.totalorder %s112, %s113
      %p127 = scmp.eq.s32.totalorder %s16, 1
      %p128 = por %p126, %p127
      %p130 = scmp.ne.s32.totalorder %s113, %s129
      %p131 = scmp.eq.s32.totalorder %s16, 0
      %p132 = por %p130, %p131
      %p133 = scmp.le.s32.totalorder 1, %s10
      %p134 = scmp.lt.s32.totalorder %s10, 3
      %p135 = pnand %p133, %p134
      %p136 = pneg %p135
      // Predicated region
      $region9: #{upconv_block.3} parent=5 // pred_check
        _
      $region10: #{upconv_block.3} parent=5 // pred_check_branch
        %138 = sbr.rel (%p135) target = $region12
      $region11: #{upconv_block.3} parent=5 // pred_region
        %s139 = ssub.s32 %s10, 1
        // Predicated region
        $region13: #{upconv_block.3} parent=11 // pred_check
          %p140 = pneg %p31
        $region14: #{upconv_block.3} parent=11 // pred_check_branch
          %142 = sbr.rel (%p140) target = $region16
        $region15: #{upconv_block.3} parent=11 // pred_region
          _
        $region16: #{upconv_block.3} parent=11 // pred_fallthru
          _
        // Predicated region
        $region17: #{upconv_block.3} parent=11 // pred_check
          %p143 = pneg %p52
        $region18: #{upconv_block.3} parent=11 // pred_check_branch
          %145 = sbr.rel (%p143) target = $region20
        $region19: #{upconv_block.3} parent=11 // pred_region
          _
        $region20: #{upconv_block.3} parent=11 // pred_fallthru
          _
        // Predicated region
        $region21: #{upconv_block.3} parent=11 // pred_check
          %p146 = pneg %p73
        $region22: #{upconv_block.3} parent=11 // pred_check_branch
          %148 = sbr.rel (%p146) target = $region24
        $region23: #{upconv_block.3} parent=11 // pred_region
          _
        $region24: #{upconv_block.3} parent=11 // pred_fallthru
          _
      $region12: #{upconv_block.3} parent=5 // pred_fallthru
        _
      %p149 = scmp.lt.s32.totalorder %s10, 2
      // Predicated region
      $region25: #{upconv_block.3} parent=5 // pred_check
        %p150 = pneg %p149
      $region26: #{upconv_block.3} parent=5 // pred_check_branch
        %152 = sbr.rel (%p150) target = $region28
      $region27: #{upconv_block.3} parent=5 // pred_region
        // Predicated region
        $region29: #{upconv_block.3} parent=27 // pred_check
          %p153 = pneg %p93
        $region30: #{upconv_block.3} parent=27 // pred_check_branch
          %155 = sbr.rel (%p153) target = $region32
        $region31: #{upconv_block.3} parent=27 // pred_region
          %s156 = sand.u32 %s83, 1
          %s157 = sand.u32 %s83, 1
          %s158 = smul.addr %s157, 16
          %s159 = scalar_lea.vmem [#allocation2], %s158
          %s160 = smul.u32 2, %s10
          %s161 = smul.addr %s160, 4
          %s162 = scalar_lea.vmem %s3, %s161
          // Predicated region
          $region33: #{upconv_block.3} parent=31 // pred_check
            _
          $region34: #{upconv_block.3} parent=31 // pred_check_branch
            %164 = sbr.rel (0) target = $region36
          $region35: #{upconv_block.3} parent=31 // pred_region
            // Predicated region
            $region37: #{upconv_block.3} parent=35 // pred_check
              _
            $region38: #{upconv_block.3} parent=35 // pred_check_branch
              %166 = sbr.rel (0) target = $region40
            $region39: #{upconv_block.3} parent=35 // pred_region
              // Predicated region
              $region52: #{upconv_block.3} parent=39 // pred_check
                _
              $region53: #{upconv_block.3} parent=39 // pred_check_branch
                %183 = sbr.rel (0) target = $region55
              $region54: #{upconv_block.3} parent=39 // pred_region
                loop: start=0, step=1, limit=1
                $region56: #{upconv_block.3} parent=54 // loop_pre_header
                  _
                $region57: #{upconv_block.3} parent=54 // loop_header
                  %s185 = sphi 0, %s189
                  %p186 = scmp.ge.s32.totalorder %s185, 1
                  %s190 = sphi %s162, %s162
                  %s191 = sphi %s159, %s159
                $region58: #{upconv_block.3} parent=54 // loop_header_branch
                  %188 = sbr.rel (%p186) target = $region62
                $region59: #{upconv_block.3} parent=54 // loop_body
                  %v192 = vld [vmem:[%s190] sm:$0xff]
                  %193 = vst [vmem:[%s191] sm:$0xff] %v192
                  %v194 = vld [vmem:[%s190 + $0x10] sm:$0xff]
                  %195 = vst [vmem:[%s191 + $0x8] sm:$0xff] %v194
                $region60: #{upconv_block.3} parent=54 // loop_footer
                  %s189 = sadd.s32 1, %s185
                $region61: #{upconv_block.3} parent=54 // loop_footer_branch
                  %184 = sbr.rel target = $region57
                $region62: #{upconv_block.3} parent=54 // loop_exit
                  _
              $region55: #{upconv_block.3} parent=39 // pred_fallthru
                _
              // Predicated region
              $region63: #{upconv_block.3} parent=39 // pred_check
                _
              $region64: #{upconv_block.3} parent=39 // pred_check_branch
                %197 = sbr.rel target = $region66
              $region65: #{upconv_block.3} parent=39 // pred_region
                _
              $region66: #{upconv_block.3} parent=39 // pred_fallthru
                _
            $region40: #{upconv_block.3} parent=35 // pred_fallthru
              _
            // Predicated region
            $region41: #{upconv_block.3} parent=35 // pred_check
              _
            $region42: #{upconv_block.3} parent=35 // pred_check_branch
              %168 = sbr.rel target = $region44
            $region43: #{upconv_block.3} parent=35 // pred_region
              loop: start=0, step=1, limit=1
              $region45: #{upconv_block.3} parent=43 // loop_pre_header
                _
              $region46: #{upconv_block.3} parent=43 // loop_header
                %s171 = sphi 0, %s175
                %p172 = scmp.ge.s32.totalorder %s171, 1
                %s176 = sphi %s162, %s162
                %s177 = sphi %s159, %s159
              $region47: #{upconv_block.3} parent=43 // loop_header_branch
                %174 = sbr.rel (%p172) target = $region51
              $region48: #{upconv_block.3} parent=43 // loop_body
                %v178 = vld [vmem:[%s176] sm:$0xff]
                %179 = vst [vmem:[%s177] sm:$0xff] %v178
                %v180 = vld [vmem:[%s176 + $0x10] sm:$0xff]
                %181 = vst [vmem:[%s177 + $0x8] sm:$0xff] %v180
              $region49: #{upconv_block.3} parent=43 // loop_footer
                %s175 = sadd.s32 1, %s171
              $region50: #{upconv_block.3} parent=43 // loop_footer_branch
                %170 = sbr.rel target = $region46
              $region51: #{upconv_block.3} parent=43 // loop_exit
                _
            $region44: #{upconv_block.3} parent=35 // pred_fallthru
              _
          $region36: #{upconv_block.3} parent=31 // pred_fallthru
            _
          %198 = vnop
        $region32: #{upconv_block.3} parent=27 // pred_fallthru
          _
      $region28: #{upconv_block.3} parent=5 // pred_fallthru
        _
      %p199 = scmp.le.s32.totalorder 1, %s10
      %p200 = scmp.lt.s32.totalorder %s10, 3
      %p201 = pnand %p199, %p200
      %p202 = pneg %p201
      // Predicated region
      $region67: #{upconv_block.3} parent=5 // pred_check
        _
      $region68: #{upconv_block.3} parent=5 // pred_check_branch
        %204 = sbr.rel (%p201) target = $region70
      $region69: #{upconv_block.3} parent=5 // pred_region
        %s205 = ssub.s32 %s10, 1
        %s206 = sand.u32 %s86, 1
        %s207 = sand.u32 %s86, 1
        %s208 = smul.addr %s207, 16
        %s209 = scalar_lea.vmem [#allocation2], %s208
        // Predicated region
        $region71: #{upconv_block.3} parent=69 // pred_check
          %p210 = pneg %p99
        $region72: #{upconv_block.3} parent=69 // pred_check_branch
          %212 = sbr.rel (%p210) target = $region74
        $region73: #{upconv_block.3} parent=69 // pred_region
          _
        $region74: #{upconv_block.3} parent=69 // pred_fallthru
          _
        %p213 = pneg %p31
        %p214 = pneg %p28
        %p215 = pneg %p52
        %p216 = pneg %p49
        %p217 = pneg %p73
        %p218 = pneg %p70
        %s219 = sand.u32 %s86, 1
        %s220 = sand.u32 %s86, 1
        %s221 = smul.addr %s220, 16
        %s222 = scalar_lea.vmem [#allocation2], %s221
        %p223 = pneg %p99
        %p224 = pneg %p96
        %p225 = pneg %p125
        %p226 = pneg %p122
        %s227 = sand.u32 %s112, 1
        %s228 = sand.u32 %s112, 1
        %s229 = smul.addr %s228, 64
        %s230 = scalar_lea.vmem [#allocation3], %s229
        %s231 = smul.u32 2, %s15
        %s232 = smul.u32 2, %s15
        %v234 = vld [vmem:[%s0] sm:$0xf]
        %v235 = vld [vmem:[%s0 + $0x4] sm:$0xf]
        %v236 = vld [vmem:[%s0 + $0x8] sm:$0xf]
        %v237 = vld [vmem:[%s0 + $0xc] sm:$0xf]
        %v238 = vld [vmem:[%s209] sm:$0xff]
        %v239 = vld [vmem:[%s209 + $0x8] sm:$0xff]
        %v244 = vunpack.c.l.b16 %v234
        %v245 = vunpack.c.l.b16 %v235
        %v246 = vunpack.c.l.b16 %v236
        %v247 = vunpack.c.l.b16 %v237
        %v248 = vpack.c.b16 %v245, %v244
        %v249 = vpack.c.b16 %v247, %v246
        %v252 = vunpack.c.l.b16 %v238
        %v253 = vunpack.c.h.b16 %v238
        %v254 = vunpack.c.l.b16 %v239
        %v255 = vunpack.c.h.b16 %v239
        %v256 = vpack.c.b16 %v254, %v252
        %v257 = vpack.c.b16 %v255, %v253
        %vm260 = vcmask 130048
        %v262 = vsel %vm260, %v248, 0
        %v265 = vsel %vm260, %v249, 0
        %267 = vmatprep.subr.bf16.mxu0 %v257
        %268 = vmatpush1.bf16.msra.mxu0 %v256
        %269 = vmatprep.subr.bf16.mxu0 0
        %270 = vmatpush1.bf16.msra.mxu0 0
        %271 = vmatprep.subr.bf16.mxu0 0
        %272 = vmatpush1.bf16.msra.mxu0 0
        %273 = vmatprep.subr.bf16.mxu0 0
        %274 = vmatpush1.bf16.msra.mxu0 0
        %275 = vmatprep.subr.bf16.mxu0 0
        %276 = vmatpush1.bf16.msra.mxu0 0
        %277 = vmatprep.subr.bf16.mxu0 0
        %278 = vmatpush1.bf16.msra.mxu0 0
        %279 = vmatprep.subr.bf16.mxu0 0
        %280 = vmatpush1.bf16.msra.mxu0 0
        %281 = vmatprep.subr.bf16.mxu0 0
        %282 = vmatpush1.bf16.msra.mxu0 0
        %283 = vmatprep.subr.bf16.mxu0 0
        %284 = vmatpush1.bf16.msra.mxu0 0
        %285 = vmatprep.subr.bf16.mxu0 0
        %286 = vmatpush1.bf16.msra.mxu0 0
        %287 = vmatprep.subr.bf16.mxu0 0
        %288 = vmatpush1.bf16.msra.mxu0 0
        %289 = vmatprep.subr.bf16.mxu0 0
        %290 = vmatpush1.bf16.msra.mxu0 0
        %291 = vmatprep.subr.bf16.mxu0 0
        %292 = vmatpush1.bf16.msra.mxu0 0
        %293 = vmatprep.subr.bf16.mxu0 0
        %294 = vmatpush1.bf16.msra.mxu0 0
        %295 = vmatprep.subr.bf16.mxu0 0
        %296 = vmatpush1.bf16.msra.mxu0 0
        %297 = vmatprep.subr.bf16.mxu0 0
        %298 = vmatpush1.bf16.msra.mxu0 0
        %299 = vmatprep.mubr.bf16.mxu0 0
        %300 = vmatmul.mubr.bf16.gmra.mrb[0].mxu0 %v262
        %v301 = vpop.f32.mrb[0].mxu0
        %v302 = vadd.f32 0.0, %v301
        %v303 = vpop.f32.mrb[0].mxu0
        %v304 = vadd.f32 0.0, %v303
        %v305 = vpop.f32.mrb[0].mxu0
        %v306 = vadd.f32 0.0, %v305
        %v307 = vpop.f32.mrb[0].mxu0
        %v308 = vadd.f32 0.0, %v307
        %309 = vmatprep.mubr.bf16.mxu0 0
        %310 = vmatmul.mubr.bf16.gmra.mrb[0].mxu0 %v265
        %v311 = vpop.f32.mrb[0].mxu0
        %v312 = vadd.f32 0.0, %v311
        %v313 = vpop.f32.mrb[0].mxu0
        %v314 = vadd.f32 0.0, %v313
        %v315 = vpop.f32.mrb[0].mxu0
        %v316 = vadd.f32 0.0, %v315
        %v317 = vpop.f32.mrb[0].mxu0
        %v318 = vadd.f32 0.0, %v317
        %319 = vdwg.mxu0
        %v320 = vld [vmem:[%s1] sm:$0xff]
        %v321 = vld [vmem:[%s1 + $0x8] sm:$0xff]
        %v322 = vld [vmem:[%s1 + $0x10] sm:$0xff]
        %v323 = vld [vmem:[%s1 + $0x18] sm:$0xff]
        %325 = vset.pattern.permute.xlu0 0
        %326 = vperm.xlu0 %325, %v320
        %v327 = vpop.permute.xlu0 %326
        %330 = vset.pattern.permute.xlu0 0
        %331 = vperm.xlu0 %330, %v321
        %v332 = vpop.permute.xlu0 %331
        %335 = vset.pattern.permute.xlu0 0
        %336 = vperm.xlu0 %335, %v322
        %v337 = vpop.permute.xlu0 %336
        %340 = vset.pattern.permute.xlu0 0
        %341 = vperm.xlu0 %340, %v323
        %v342 = vpop.permute.xlu0 %341
        %v344 = vmul.f32 %v302, %v327
        %v345 = vmul.f32 %v304, %v327
        %v346 = vmul.f32 %v306, %v332
        %v347 = vmul.f32 %v308, %v332
        %v348 = vmul.f32 %v312, %v337
        %v349 = vmul.f32 %v314, %v337
        %v350 = vmul.f32 %v316, %v342
        %v351 = vmul.f32 %v318, %v342
        %v352 = vld [vmem:[%s2] sm:$0xff]
        %v353 = vld [vmem:[%s2 + $0x8] sm:$0xff]
        %v354 = vld [vmem:[%s2 + $0x10] sm:$0xff]
        %v355 = vld [vmem:[%s2 + $0x18] sm:$0xff]
        %357 = vset.pattern.permute.xlu0 0
        %358 = vperm.xlu0 %357, %v352
        %v359 = vpop.permute.xlu0 %358
        %362 = vset.pattern.permute.xlu0 0
        %363 = vperm.xlu0 %362, %v353
        %v364 = vpop.permute.xlu0 %363
        %367 = vset.pattern.permute.xlu0 0
        %368 = vperm.xlu0 %367, %v354
        %v369 = vpop.permute.xlu0 %368
        %372 = vset.pattern.permute.xlu0 0
        %373 = vperm.xlu0 %372, %v355
        %v374 = vpop.permute.xlu0 %373
        %v376 = vadd.f32 %v344, %v359
        %v377 = vadd.f32 %v345, %v359
        %v378 = vadd.f32 %v346, %v364
        %v379 = vadd.f32 %v347, %v364
        %v380 = vadd.f32 %v348, %v369
        %v381 = vadd.f32 %v349, %v369
        %v382 = vadd.f32 %v350, %v374
        %v383 = vadd.f32 %v351, %v374
        %v384 = vmax.f32 %v376, 0.0
        %v385 = vmax.f32 %v377, 0.0
        %v386 = vmax.f32 %v378, 0.0
        %v387 = vmax.f32 %v379, 0.0
        %v388 = vmax.f32 %v380, 0.0
        %v389 = vmax.f32 %v381, 0.0
        %v390 = vmax.f32 %v382, 0.0
        %v391 = vmax.f32 %v383, 0.0
        %392 = vst [vmem:[%s230] sm:$0xff] %v384
        %393 = vst [vmem:[%s230 + $0x8] sm:$0xff] %v385
        %394 = vst [vmem:[%s230 + $0x10] sm:$0xff] %v386
        %395 = vst [vmem:[%s230 + $0x18] sm:$0xff] %v387
        %396 = vst [vmem:[%s230 + $0x20] sm:$0xff] %v388
        %397 = vst [vmem:[%s230 + $0x28] sm:$0xff] %v389
        %398 = vst [vmem:[%s230 + $0x30] sm:$0xff] %v390
        %399 = vst [vmem:[%s230 + $0x38] sm:$0xff] %v391
        %s400 = sand.u32 %s112, 1
        %s401 = sand.u32 %s112, 1
        %s402 = smul.addr %s401, 64
        %s403 = scalar_lea.vmem [#allocation3], %s402
        // Predicated region
        $region75: #{upconv_block.3} parent=69 // pred_check
          %p404 = pneg %p122
        $region76: #{upconv_block.3} parent=69 // pred_check_branch
          %406 = sbr.rel (%p404) target = $region78
        $region77: #{upconv_block.3} parent=69 // pred_region
          %s407 = smul.u32 2, %s15
          %s408 = smul.addr %s407, 8
          %s409 = scalar_lea.vmem %s4, %s408
          // Predicated region
          $region79: #{upconv_block.3} parent=77 // pred_check
            _
          $region80: #{upconv_block.3} parent=77 // pred_check_branch
            %411 = sbr.rel (0) target = $region82
          $region81: #{upconv_block.3} parent=77 // pred_region
            // Predicated region
            $region83: #{upconv_block.3} parent=81 // pred_check
              _
            $region84: #{upconv_block.3} parent=81 // pred_check_branch
              %413 = sbr.rel (0) target = $region86
            $region85: #{upconv_block.3} parent=81 // pred_region
              loop: start=0, step=1, limit=1
              $region87: #{upconv_block.3} parent=85 // loop_pre_header
                _
              $region88: #{upconv_block.3} parent=85 // loop_header
                %s415 = sphi 0, %s419
                %p416 = scmp.ge.s32.totalorder %s415, 1
                %s420 = sphi %s403, %s403
                %s421 = sphi %s409, %s409
              $region89: #{upconv_block.3} parent=85 // loop_header_branch
                %418 = sbr.rel (%p416) target = $region93
              $region90: #{upconv_block.3} parent=85 // loop_body
                %v422 = vld [vmem:[%s420] sm:$0xff]
                %423 = vst [vmem:[%s421] sm:$0xff] %v422
                %v424 = vld [vmem:[%s420 + $0x8] sm:$0xff]
                %425 = vst [vmem:[%s421 + $0x8] sm:$0xff] %v424
                %v426 = vld [vmem:[%s420 + $0x10] sm:$0xff]
                %427 = vst [vmem:[%s421 + $0x20] sm:$0xff] %v426
                %v428 = vld [vmem:[%s420 + $0x18] sm:$0xff]
                %429 = vst [vmem:[%s421 + $0x28] sm:$0xff] %v428
                %v430 = vld [vmem:[%s420 + $0x20] sm:$0xff]
                %431 = vst [vmem:[%s421 + $0x40] sm:$0xff] %v430
                %v432 = vld [vmem:[%s420 + $0x28] sm:$0xff]
                %433 = vst [vmem:[%s421 + $0x48] sm:$0xff] %v432
                %v434 = vld [vmem:[%s420 + $0x30] sm:$0xff]
                %435 = vst [vmem:[%s421 + $0x60] sm:$0xff] %v434
                %v436 = vld [vmem:[%s420 + $0x38] sm:$0xff]
                %437 = vst [vmem:[%s421 + $0x68] sm:$0xff] %v436
              $region91: #{upconv_block.3} parent=85 // loop_footer
                %s419 = sadd.s32 1, %s415
              $region92: #{upconv_block.3} parent=85 // loop_footer_branch
                %414 = sbr.rel target = $region88
              $region93: #{upconv_block.3} parent=85 // loop_exit
                _
            $region86: #{upconv_block.3} parent=81 // pred_fallthru
              _
            // Predicated region
            $region94: #{upconv_block.3} parent=81 // pred_check
              _
            $region95: #{upconv_block.3} parent=81 // pred_check_branch
              %439 = sbr.rel target = $region97
            $region96: #{upconv_block.3} parent=81 // pred_region
              _
            $region97: #{upconv_block.3} parent=81 // pred_fallthru
              _
          $region82: #{upconv_block.3} parent=77 // pred_fallthru
            _
          %440 = vnop
        $region78: #{upconv_block.3} parent=69 // pred_fallthru
          _
      $region70: #{upconv_block.3} parent=5 // pred_fallthru
        _
      %p441 = scmp.le.s32.totalorder 2, %s10
      // Predicated region
      $region98: #{upconv_block.3} parent=5 // pred_check
        %p442 = pneg %p441
      $region99: #{upconv_block.3} parent=5 // pred_check_branch
        %444 = sbr.rel (%p442) target = $region101
      $region100: #{upconv_block.3} parent=5 // pred_region
        %s445 = ssub.s32 %s10, 2
        // Predicated region
        $region102: #{upconv_block.3} parent=100 // pred_check
          %p446 = pneg %p128
        $region103: #{upconv_block.3} parent=100 // pred_check_branch
          %448 = sbr.rel (%p446) target = $region105
        $region104: #{upconv_block.3} parent=100 // pred_region
          %s449 = sand.u32 %s113, 1
          %s450 = sand.u32 %s113, 1
          %s451 = smul.addr %s450, 64
          %s452 = scalar_lea.vmem [#allocation3], %s451
        $region105: #{upconv_block.3} parent=100 // pred_fallthru
          _
      $region101: #{upconv_block.3} parent=5 // pred_fallthru
        _
    $region6: #{upconv_block.3} parent=1 // loop_footer
      %s14 = sadd.s32 1, %s10
    $region7: #{upconv_block.3} parent=1 // loop_footer_branch
      %9 = sbr.rel target = $region3
    $region8: #{upconv_block.3} parent=1 // loop_exit
      _

</llo_original>
